<compile_context>
chip_gen: v7x
topology: tpu7x:2x2x1
jax: 0.10.0
libtpu: 0.0.40
codegen_flags: <defaults>
</compile_context>

<pallas_src>
import jax
import jax.numpy as jnp
from jax import lax
from jax.experimental import pallas as pl
from jax.experimental.pallas import tpu as pltpu

LANE = 128      # vreg lane width
SUBLANE = 8     # f32 sublane count
_ALIGN = SUBLANE * LANE  # 1024 elements


def _device_defaults():
    """Return (max_tile_rows, num_tensorcores) for the current TPU chip."""
    try:
        kind = jax.devices()[0].device_kind.lower()
    except Exception:
        kind = ""
    is_v7x = ("7x" in kind) or ("v7" in kind)
    is_v6 = "v6" in kind
    # 4096 rows x 128 lanes x 4 B = 2 MiB per input block (double-buffered);
    # cap at 2048 rows on v5e / unknown chips (16 MiB scoped-VMEM default).
    max_tile_rows = 4096 if (is_v7x or is_v6) else 2048
    num_tc = 2 if is_v7x else 1
    return max_tile_rows, num_tc


def _cdiv(a, b):
    return -(-a // b)


def _make_l2_kernel(weighted, tile_rows, cpp, rows_valid, exact):
    """Build the streaming-reduction kernel. All configuration is static."""

    def kernel(*refs):
        if weighted:
            pred_ref, gt_ref, w_ref, out_ref, acc_ref = refs
        else:
            pred_ref, gt_ref, out_ref, acc_ref = refs
            w_ref = None

        p = pl.program_id(0)
        c = pl.program_id(1)

        @pl.when(c == 0)
        def _():
            acc_ref[...] = jnp.zeros_like(acc_ref)

        d = pred_ref[...].astype(jnp.float32) - gt_ref[...].astype(jnp.float32)
        val = d * d
        if weighted:
            val = val * w_ref[...].astype(jnp.float32)

        if exact:
            # Grid covers the slab exactly: plain VPU accumulate, no masking.
            acc_ref[...] += val
        else:
            row0 = (p * cpp + c) * tile_rows

            # Interior, fully-valid block: fast path (no mask work).
            @pl.when(row0 + tile_rows <= rows_valid)
            def _():
                acc_ref[...] += val

            # Boundary block: mask rows past the logical end of the slab.
            # (jnp.where is a select, so garbage/NaN in the padding is safe.)
            @pl.when(jnp.logical_and(row0 < rows_valid,
                                     row0 + tile_rows > rows_valid))
            def _():
                local = lax.broadcasted_iota(jnp.int32, (tile_rows, 1), 0)
                acc_ref[...] += jnp.where(row0 + local < rows_valid, val, 0.0)

            # Clamped duplicate blocks (row0 >= rows_valid) are skipped whole.

        @pl.when(c == pl.num_programs(1) - 1)
        def _():
            # Single cross-lane reduce once per part.
            out_ref[0, 0] = jnp.sum(acc_ref[...])

    return kernel


def _l2_partial_sums(slabs, tile_rows, num_parts, cpp, chunks, rows_valid,
                     weighted):
    exact = (num_parts * cpp * tile_rows == rows_valid)
    kernel = _make_l2_kernel(weighted, tile_rows, cpp, rows_valid, exact)

    # Clamp so an uneven part split never issues an out-of-bounds DMA; the
    # clamped duplicate blocks are skipped inside the kernel.
    def in_map(p, c):
        return (jnp.minimum(p * cpp + c, chunks - 1), 0)

    n_streams = len(slabs)
    block_bytes = tile_rows * LANE * 4
    # inputs double-buffered + f32 accumulator + headroom for Mosaic scratch.
    vmem_bytes = n_streams * 2 * block_bytes + block_bytes + (4 << 20)

    prefix_elems = rows_valid * LANE
    cost = pl.CostEstimate(
        flops=(4 if weighted else 3) * prefix_elems,
        transcendentals=0,
        bytes_accessed=n_streams * 4 * prefix_elems + 4 * num_parts,
    )

    def run(first_axis_semantics):
        return pl.pallas_call(
            kernel,
            out_shape=jax.ShapeDtypeStruct((num_parts, 1), jnp.float32),
            grid_spec=pltpu.PrefetchScalarGridSpec(
                num_scalar_prefetch=0,
                grid=(num_parts, cpp),
                in_specs=[pl.BlockSpec((tile_rows, LANE), in_map)
                          for _ in slabs],
                out_specs=pl.BlockSpec((1, 1), lambda p, c: (p, 0),
                                       memory_space=pltpu.SMEM),
                scratch_shapes=[pltpu.VMEM((tile_rows, LANE), jnp.float32)],
            ),
            compiler_params=pltpu.CompilerParams(
                dimension_semantics=(first_axis_semantics, "arbitrary"),
                vmem_limit_bytes=int(vmem_bytes)),
            cost_estimate=cost,
        )(*slabs)

    if num_parts > 1:
        # Shard the parts axis across the two TensorCores of a v7x chip.
        try:
            return run(pltpu.CORE_PARALLEL)
        except Exception:
            return run("parallel")
    return run("arbitrary")


class L2Loss:
    """JAX/Pallas port of diffengine L2Loss."""

    def __init__(self, loss_weight: float = 1.0, loss_name: str = "l2",
                 max_tile_rows=None, num_tensorcores=None):
        self.loss_weight = loss_weight
        self._loss_name = loss_name
        dflt_tile, dflt_tc = _device_defaults()
        self._max_tile_rows = dflt_tile if max_tile_rows is None else int(max_tile_rows)
        self._num_tc = dflt_tc if num_tensorcores is None else int(num_tensorcores)

    def __call__(self, pred, gt, weight=None):
        assert pred.shape == gt.shape
        n_elems = int(pred.size)
        scale = float(self.loss_weight) / float(n_elems)

        weighted = weight is not None
        if weighted and weight.shape != pred.shape:
            # TODO(synk): broadcast low-rank (e.g. per-channel) weights inside
            # the kernel instead of materializing a full-size copy in HBM.
            weight = jnp.broadcast_to(weight, pred.shape)

        flats = [pred.reshape(-1), gt.reshape(-1)]
        if weighted:
            flats.append(weight.reshape(-1))

        # Aligned prefix handled by the kernel (pure reshape when already
        # aligned); ragged tail (< 1024 elements) reduced with fused jnp.
        rows8 = (n_elems // _ALIGN) * SUBLANE
        prefix = rows8 * LANE

        total = jnp.float32(0.0)

        if rows8 > 0:
            tile_rows = min(self._max_tile_rows, rows8)
            chunks = _cdiv(rows8, tile_rows)
            num_parts = self._num_tc if chunks >= self._num_tc else 1
            cpp = _cdiv(chunks, num_parts)

            if prefix == n_elems:
                slabs = [f.reshape(rows8, LANE) for f in flats]
            else:
                slabs = [f[:prefix].reshape(rows8, LANE) for f in flats]

            partials = _l2_partial_sums(slabs, tile_rows, num_parts, cpp,
                                        chunks, rows8, weighted)
            total = total + jnp.sum(partials)

        if prefix < n_elems:
            tp = flats[0][prefix:].astype(jnp.float32)
            tg = flats[1][prefix:].astype(jnp.float32)
            td = tp - tg
            tv = td * td
            if weighted:
                tv = tv * flats[2][prefix:].astype(jnp.float32)
            total = total + jnp.sum(tv)

        return total * jnp.float32(scale)

    @property
    def loss_name(self):
        return self._loss_name


if __name__ == "__main__":
    key = jax.random.PRNGKey(0)
    k1, k2, k3 = jax.random.split(key, 3)

    def check(shape, label, rtol, max_tile_rows=None):
        loss_fn = L2Loss(loss_weight=0.5, max_tile_rows=max_tile_rows)
        p = jax.random.normal(k1, shape, dtype=jnp.float32)
        g = jax.random.normal(k2, shape, dtype=jnp.float32)
        w = jax.random.uniform(k3, shape, dtype=jnp.float32)

        out_plain = jax.block_until_ready(loss_fn(p, g))
        ref_plain = jnp.mean((p - g) ** 2) * 0.5
        assert jnp.allclose(out_plain, ref_plain, rtol=rtol, atol=1e-6), label

        out_w = jax.block_until_ready(loss_fn(p, g, w))
        ref_w = jnp.mean((p - g) ** 2 * w) * 0.5
        assert jnp.allclose(out_w, ref_w, rtol=rtol, atol=1e-6), label

    # primary: small NCHW, element count multiple of 1024 -> pure reshape,
    # single exact block, no masking code emitted.
    check((2, 4, 16, 16), "small", rtol=1e-5)
    # ragged element count -> aligned-prefix kernel + <1024-element jnp tail.
    check((2, 3, 40, 50), "ragged", rtol=1e-4)
    # forced small tile -> multi-chunk grid, gated partial-block row masking,
    # and (on multi-TC chips) the 2-part split with duplicate-chunk skip.
    check((2, 4, 132, 256), "multichunk", rtol=1e-4, max_tile_rows=128)

    print("KERNEL_OK")
</pallas_src>

<mosaic_0001>
module attributes {stable_mosaic.version = 11 : i64} {
  func.func @kernel(%arg0: i32, %arg1: i32, %arg2: memref<16x128xf32, #tpu.memory_space<vmem>>, %arg3: memref<16x128xf32, #tpu.memory_space<vmem>>, %arg4: memref<1x1xf32, #tpu.memory_space<smem>>, %arg5: memref<16x128xf32, #tpu.memory_space<vmem>>) attributes {dimension_semantics = [#tpu.dimension_semantics<arbitrary>, #tpu.dimension_semantics<arbitrary>], iteration_bounds = array<i64: 1, 1>, scalar_prefetch = 0 : i64, scratch_operands = 1 : i64, tpu.core_type = #tpu.core_type<tc>, window_params = [{transform_indices = @transform_0, window_bounds = array<i64: 16, 128>}, {transform_indices = @transform_1, window_bounds = array<i64: 16, 128>}, {transform_indices = @transform_2, window_bounds = array<i64: 1, 1>}]} {
    %c0_i32 = arith.constant 0 : i32
    %0 = arith.cmpi eq, %arg1, %c0_i32 : i32
    %1 = arith.extui %0 : i1 to i32
    %c0_i32_0 = arith.constant 0 : i32
    %2 = arith.cmpi ne, %1, %c0_i32_0 : i32
    scf.if %2 {
      %cst = arith.constant 0.000000e+00 : f32
      %13 = vector.broadcast %cst : f32 to vector<16x128xf32>
      %c0_10 = arith.constant 0 : index
      %c0_11 = arith.constant 0 : index
      %14 = vector.load %arg5[%c0_10, %c0_11] : memref<16x128xf32, #tpu.memory_space<vmem>>, vector<16x128xf32>
      tpu.vector_store %arg5[%c0_10, %c0_11], %13 {strides = array<i32>} : memref<16x128xf32, #tpu.memory_space<vmem>>, vector<16x128xf32>,
    } else {
    }
    %c0 = arith.constant 0 : index
    %c0_1 = arith.constant 0 : index
    %3 = vector.load %arg2[%c0, %c0_1] : memref<16x128xf32, #tpu.memory_space<vmem>>, vector<16x128xf32>
    %c0_2 = arith.constant 0 : index
    %c0_3 = arith.constant 0 : index
    %4 = vector.load %arg3[%c0_2, %c0_3] : memref<16x128xf32, #tpu.memory_space<vmem>>, vector<16x128xf32>
    %5 = arith.subf %3, %4 : vector<16x128xf32>
    %6 = arith.mulf %5, %5 : vector<16x128xf32>
    %c0_4 = arith.constant 0 : index
    %c0_5 = arith.constant 0 : index
    %7 = vector.load %arg5[%c0_4, %c0_5] : memref<16x128xf32, #tpu.memory_space<vmem>>, vector<16x128xf32>
    %8 = arith.addf %7, %6 : vector<16x128xf32>
    %c0_6 = arith.constant 0 : index
    %c0_7 = arith.constant 0 : index
    %9 = vector.load %arg5[%c0_6, %c0_7] : memref<16x128xf32, #tpu.memory_space<vmem>>, vector<16x128xf32>
    tpu.vector_store %arg5[%c0_6, %c0_7], %8 {strides = array<i32>} : memref<16x128xf32, #tpu.memory_space<vmem>>, vector<16x128xf32>,
    %c0_i32_8 = arith.constant 0 : i32
    %10 = arith.cmpi eq, %arg1, %c0_i32_8 : i32
    %11 = arith.extui %10 : i1 to i32
    %c0_i32_9 = arith.constant 0 : i32
    %12 = arith.cmpi ne, %11, %c0_i32_9 : i32
    scf.if %12 {
      %c0_10 = arith.constant 0 : index
      %c0_11 = arith.constant 0 : index
      %13 = vector.load %arg5[%c0_10, %c0_11] : memref<16x128xf32, #tpu.memory_space<vmem>>, vector<16x128xf32>
      %14 = vector.shape_cast %13 : vector<16x128xf32> to vector<1x16x128xf32>
      %cst = arith.constant dense<0.000000e+00> : vector<1xf32>
      %15 = vector.multi_reduction <add>, %14, %cst [1, 2] : vector<1x16x128xf32> to vector<1xf32>
      %16 = vector.shape_cast %15 : vector<1xf32> to vector<1x1x1xf32>
      %17 = vector.extract %16[0, 0, 0] : f32 from vector<1x1x1xf32>
      %c0_12 = arith.constant 0 : index
      %c0_13 = arith.constant 0 : index
      %18 = memref.load %arg4[%c0_12, %c0_13] : memref<1x1xf32, #tpu.memory_space<smem>>
      memref.store %17, %arg4[%c0_12, %c0_13] : memref<1x1xf32, #tpu.memory_space<smem>>
    } else {
    }
    return
  }
  func.func @transform_0(%arg0: i32, %arg1: i32) -> (i32, i32) {
    %c1_i32 = arith.constant 1 : i32
    %0 = arith.muli %arg0, %c1_i32 : i32
    %1 = arith.addi %0, %arg1 : i32
    %c0_i32 = arith.constant 0 : i32
    %2 = arith.minsi %1, %c0_i32 : i32
    %c0_i32_0 = arith.constant 0 : i32
    %c0_i32_1 = arith.constant 0 : i32
    return %2, %c0_i32_0 : i32, i32
  }
  func.func @transform_1(%arg0: i32, %arg1: i32) -> (i32, i32) {
    %c1_i32 = arith.constant 1 : i32
    %0 = arith.muli %arg0, %c1_i32 : i32
    %1 = arith.addi %0, %arg1 : i32
    %c0_i32 = arith.constant 0 : i32
    %2 = arith.minsi %1, %c0_i32 : i32
    %c0_i32_0 = arith.constant 0 : i32
    %c0_i32_1 = arith.constant 0 : i32
    return %2, %c0_i32_0 : i32, i32
  }
  func.func @transform_2(%arg0: i32, %arg1: i32) -> (i32, i32) {
    %c0_i32 = arith.constant 0 : i32
    %c0_i32_0 = arith.constant 0 : i32
    return %arg0, %c0_i32 : i32, i32
  }
}

</mosaic_0001>

<llo_original>
// kernel: tpu_custom_call.1
$region0: #{tpu_custom_call.1}
  #allocation0 [shape = 'u32[]', space=smem, size = 0x4, offset = 0x4, fixed_abs, tag = 'smem constant byte address 0x4 - core index']
  #allocation1 [shape = 'u32[144,128]{1,0:T(1,128)}', space=vmem, size = 0x12000, scoped, tag = 'internal scratch']
  #allocation2 [shape = 'f32[16,128]{1,0:T(8,128)}', space=vmem, size = 0x2000, scoped, tag = 'scratch operand']
  %s0 = inlined_call_operand.hbm [shape: f32[16,128], index: 0, kind: input, shape index: {}]
  %s1 = inlined_call_operand.hbm [shape: f32[16,128], index: 1, kind: input, shape index: {}]
  %s2 = inlined_call_operand.hbm [shape: f32[1,1], index: 2, kind: output, shape index: {}]
  %s3 = sld [smem:[#allocation0]]
  $region34: #{tpu_custom_call.1} parent=0
    _
  %s5 = ssub.s32 1, %s3
  %s6 = scalar_select 0, %s5, %s3
  $region1: #{tpu_custom_call.1} parent=0
    #allocation3 [shape = 'u8[8192]{0}', space=vmem, size = 0x2000, scoped, tag = 'input window, operand 0, single buffered']
    #allocation4 [shape = 's32[1]{0}', space=sflag, size = 0x4, scoped, tag = 'scoped memory for tpu_custom_call.1']
    #allocation5 [shape = 's32[1]{0}', space=sflag, size = 0x4, scoped, tag = 'scoped memory for tpu_custom_call.1']
    #allocation6 [shape = 'u8[8192]{0}', space=vmem, size = 0x2000, scoped, tag = 'input window, operand 1, single buffered']
    #allocation7 [shape = 's32[1]{0}', space=sflag, size = 0x4, scoped, tag = 'scoped memory for tpu_custom_call.1']
    #allocation8 [shape = 'u8[512]{0}', space=smem, size = 0x200, scoped, tag = 'output window, operand 0, single buffered']
    %7 = vsyncpa [#allocation4], 0
    %8 = vsyncpa [#allocation7], 0
    %9 = vsyncpa [#allocation5], 0
    // Predicated region
    $region2: #{tpu_custom_call.1} parent=1 // pred_check
      _
    $region3: #{tpu_custom_call.1} parent=1 // pred_check_branch
      %11 = sbr.rel (0) target = $region5
    $region4: #{tpu_custom_call.1} parent=1 // pred_region
      %s12 = sadd.s32 0, 0
      %p13 = scmp.lt.s32.totalorder %s12, 0
      %s14 = scalar_select %p13, %s12, 0
      %s15 = smul.u32 2, %s14
      %s17 = ssub.s32 256, 256
      %18 = vsyncadd [#allocation4], %s17
      %s19 = smul.addr %s15, 128
      %s20 = scalar_lea.hbm %s0, %s19
      %s21 = sshll.u32 [#allocation3], 4
      %s22 = int_to_ptr.vmem [resolvable:$true] %s21
      %27 = dma.hbm_to_vmem [thread:$0]  %s20, 256, %s22, [#allocation4], 128, 128, 8
    $region5: #{tpu_custom_call.1} parent=1 // pred_fallthru
      _
    // Predicated region
    $region6: #{tpu_custom_call.1} parent=1 // pred_check
      _
    $region7: #{tpu_custom_call.1} parent=1 // pred_check_branch
      %29 = sbr.rel (0) target = $region9
    $region8: #{tpu_custom_call.1} parent=1 // pred_region
      %s30 = sadd.s32 0, 0
      %p31 = scmp.lt.s32.totalorder %s30, 0
      %s32 = scalar_select %p31, %s30, 0
      %s33 = smul.u32 2, %s32
      %s35 = ssub.s32 256, 256
      %36 = vsyncadd [#allocation7], %s35
      %s37 = smul.addr %s33, 128
      %s38 = scalar_lea.hbm %s1, %s37
      %s39 = sshll.u32 [#allocation6], 4
      %s40 = int_to_ptr.vmem [resolvable:$true] %s39
      %45 = dma.hbm_to_vmem [thread:$0]  %s38, 256, %s40, [#allocation7], 128, 128, 8
    $region9: #{tpu_custom_call.1} parent=1 // pred_fallthru
      _
    // Predicated region
    $region10: #{tpu_custom_call.1} parent=1 // pred_check
      _
    $region11: #{tpu_custom_call.1} parent=1 // pred_check_branch
      %47 = sbr.rel (0) target = $region13
    $region12: #{tpu_custom_call.1} parent=1 // pred_region
      %48 = dma.done [#allocation4], 256
    $region13: #{tpu_custom_call.1} parent=1 // pred_fallthru
      _
    // Predicated region
    $region14: #{tpu_custom_call.1} parent=1 // pred_check
      _
    $region15: #{tpu_custom_call.1} parent=1 // pred_check_branch
      %50 = sbr.rel (0) target = $region17
    $region16: #{tpu_custom_call.1} parent=1 // pred_region
      %51 = dma.done [#allocation7], 256
    $region17: #{tpu_custom_call.1} parent=1 // pred_fallthru
      _
    %s52 = sadd.s32 0, 0
    %p53 = scmp.lt.s32.totalorder %s52, 0
    %s54 = scalar_select %p53, %s52, 0
    %s55 = smul.u32 2, %s54
    %s56 = sadd.s32 0, 0
    %p57 = scmp.lt.s32.totalorder %s56, 0
    %s58 = scalar_select %p57, %s56, 0
    %s59 = smul.u32 2, %s58
    %p60 = scmp.eq.s32.totalorder 0, 0
    // Predicated region
    $region18: #{tpu_custom_call.1} parent=1 // pred_check
      %p61 = pneg %p60
    $region19: #{tpu_custom_call.1} parent=1 // pred_check_branch
      %63 = sbr.rel (%p61) target = $region21
    $region20: #{tpu_custom_call.1} parent=1 // pred_region
      %64 = vst [vmem:[#allocation2] sm:$0xff] 0.0
      %65 = vst [vmem:[#allocation2 + $0x8] sm:$0xff] 0.0
    $region21: #{tpu_custom_call.1} parent=1 // pred_fallthru
      _
    %v66 = vld [vmem:[#allocation3] sm:$0xff]
    %v67 = vld [vmem:[#allocation3 + $0x8] sm:$0xff]
    %v68 = vld [vmem:[#allocation6] sm:$0xff]
    %v69 = vld [vmem:[#allocation6 + $0x8] sm:$0xff]
    %v70 = vsub.f32 %v66, %v68
    %v71 = vsub.f32 %v67, %v69
    %v72 = vmul.f32 %v70, %v70
    %v73 = vmul.f32 %v71, %v71
    %v74 = vld [vmem:[#allocation2] sm:$0xff]
    %v75 = vld [vmem:[#allocation2 + $0x8] sm:$0xff]
    %v76 = vadd.f32 %v74, %v72
    %v77 = vadd.f32 %v75, %v73
    %78 = vst [vmem:[#allocation2] sm:$0xff] %v76
    %79 = vst [vmem:[#allocation2 + $0x8] sm:$0xff] %v77
    // Predicated region
    $region22: #{tpu_custom_call.1} parent=1 // pred_check
      %p80 = pneg %p60
    $region23: #{tpu_custom_call.1} parent=1 // pred_check_branch
      %82 = sbr.rel (%p80) target = $region25
    $region24: #{tpu_custom_call.1} parent=1 // pred_region
      %v83 = vld [vmem:[#allocation2] sm:$0xff]
      %v84 = vld [vmem:[#allocation2 + $0x8] sm:$0xff]
      %v85 = vadd.f32 %v83, %v84
      %86 = vadd.xlane.f32.xlu0 %v85
      %v87 = vpop.xlane.xlu0 %86
      %v88 = vrot.slane %v87, 4
      %v89 = vadd.f32 %v87, %v88
      %v90 = vrot.slane %v89, 2
      %v91 = vadd.f32 %v89, %v90
      %v92 = vrot.slane %v91, 1
      %v93 = vadd.f32 %v91, %v92
      %s94 = vtos %v93
      %s95 = scalar_lea.smem [#allocation8], 0
      %96 = sst [smem:[%s95]] %s94
    $region25: #{tpu_custom_call.1} parent=1 // pred_fallthru
      _
    // Predicated region
    $region26: #{tpu_custom_call.1} parent=1 // pred_check
      _
    $region27: #{tpu_custom_call.1} parent=1 // pred_check_branch
      %98 = sbr.rel (0) target = $region29
    $region28: #{tpu_custom_call.1} parent=1 // pred_region
      %s100 = ssub.s32 16, 16
      %101 = vsyncadd [#allocation5], %s100
      %104 = dma.smem_to_hbm [#allocation8], 16, %s2, [#allocation5]
    $region29: #{tpu_custom_call.1} parent=1 // pred_fallthru
      _
    // Predicated region
    $region30: #{tpu_custom_call.1} parent=1 // pred_check
      _
    $region31: #{tpu_custom_call.1} parent=1 // pred_check_branch
      %106 = sbr.rel (0) target = $region33
    $region32: #{tpu_custom_call.1} parent=1 // pred_region
      %107 = dma.done [#allocation5], 16
    $region33: #{tpu_custom_call.1} parent=1 // pred_fallthru
      _
    %108 = sfence
    %109 = vsyncpa [#allocation4], 1
    %110 = vsyncpa [#allocation7], 1
    %111 = vsyncpa [#allocation5], 1

</llo_original>
